<compile_context>
chip_gen: v7x
topology: tpu7x:2x2x1
jax: 0.10.0
libtpu: 0.0.40
codegen_flags: <defaults>
</compile_context>

<pallas_src>
import functools

import jax
import jax.numpy as jnp
from jax import lax
from jax.experimental import pallas as pl
from jax.experimental.pallas import tpu as pltpu


def _down_kernel(pooled_ref, coords_ref, w1_ref, a1_ref, b1_ref,
                 w2_ref, a2_ref, b2_ref, out_ref, *, hp, wp):
    # pooled_ref: (c_in, L) bf16 -- already max-pooled, spatial flattened into
    # the lane axis (L = TB * hp * wp).  Upcast once; all elementwise in f32.
    p = pooled_ref[...].astype(jnp.float32)            # (c_in, L)
    yy = coords_ref[0:1, :]                            # (1, L) int32 row idx
    xx = coords_ref[1:2, :]                            # (1, L) int32 col idx
    L = p.shape[-1]

    # Halo-validity masks for the 8 non-center taps, shared by both convs.
    # A lane is masked off when the tap's source pixel falls outside its own
    # (hp, wp) sample -- this also zeroes every lane whose rolled source
    # wrapped across a sample or block boundary.
    masks = {}
    for dy in (-1, 0, 1):
        for dx in (-1, 0, 1):
            if dy == 0 and dx == 0:
                continue
            masks[(dy, dx)] = ((yy + dy >= 0) & (yy + dy < hp) &
                               (xx + dx >= 0) & (xx + dx < wp))

    def conv3x3(inp, w_flat, a, b):
        # inp: (cin, L) f32; w_flat: (oc, 9*cin) bf16  ->  (oc, L) f32
        taps = []
        for dy in (-1, 0, 1):
            for dx in (-1, 0, 1):
                shift = (-(dy * wp + dx)) % L           # static Python int
                # Static-shift lane roll -> XLU rotate path (off the VPU/MXU).
                src = inp if shift == 0 else jnp.roll(inp, shift, axis=1)
                if (dy, dx) != (0, 0):
                    src = jnp.where(masks[(dy, dx)], src, 0.0)
                taps.append(src)
        # One fused MXU matmul over all 9 taps (contraction dim = 9*cin).
        stacked = jnp.concatenate(taps, axis=0).astype(jnp.bfloat16)
        y = jnp.dot(w_flat, stacked, preferred_element_type=jnp.float32)
        # Folded conv-bias + BatchNorm (running stats) per-channel FMA + ReLU.
        return jnp.maximum(y * a + b, 0.0)

    h = conv3x3(p, w1_ref[...], a1_ref[...], b1_ref[...])
    y = conv3x3(h, w2_ref[...], a2_ref[...], b2_ref[...])
    out_ref[...] = y.astype(out_ref.dtype)              # (oc, L) lane-dense


def _pick_tb(n, S, c_in, oc, budget_bytes=16 << 20):
    """Samples per grid step.  Prefer the LARGEST block whose per-step working
    set fits a conservative VMEM budget (lane width multiple of 128 so output
    stores stay unmasked).  Keep >=2 parallel grid steps (v7x dual-TC) only
    when each block is already large."""
    def block_bytes(tb):
        L = tb * S
        stream = 2 * (c_in * L * 2 + oc * L * 4 + 2 * L * 4)  # dbl-buffered I/O
        interm = L * (4 * c_in + 6 * 9 * c_in + 6 * 9 * oc + 8 * oc)
        return stream + interm

    cands = sorted(d for d in range(1, n + 1)
                   if n % d == 0 and ((d * S) % 128 == 0 or d == n))
    fitting = [d for d in cands if block_bytes(d) <= budget_bytes]
    if not fitting:
        return cands[0]
    multi = [d for d in fitting if n // d >= 2 and d * S >= 2048]
    return max(multi) if multi else max(fitting)


def down_forward(x, conv1_w, conv1_b, bn1_g, bn1_b, bn1_m, bn1_v,
                 conv2_w, conv2_b, bn2_g, bn2_b, bn2_m, bn2_v, eps=1e-5):
    n, c_in, H, W = x.shape
    assert H % 2 == 0 and W % 2 == 0
    hp, wp = H // 2, W // 2
    S = hp * wp
    oc = conv1_w.shape[0]
    assert conv2_w.shape == (oc, oc, 3, 3)

    # ---- wrapper-side pooling + layout plumbing (one fused XLA HBM pass) ----
    pooled = x.reshape(n, c_in, hp, 2, wp, 2).max(axis=(3, 5))   # (n, cin, hp, wp)
    pooled = (pooled.transpose(1, 0, 2, 3)
                    .reshape(c_in, n * S)
                    .astype(jnp.bfloat16))                       # lane-dense bf16

    TB = _pick_tb(n, S, c_in, oc)       # samples per grid step
    nb = n // TB
    L = TB * S                          # lane width per block

    # (2, L) int32 per-lane (row, col) coordinates within one pooled sample,
    # tiled over the TB samples that share a block (replaces the old (9, L)
    # f32 mask stream).
    yy, xx = jnp.meshgrid(jnp.arange(hp, dtype=jnp.int32),
                          jnp.arange(wp, dtype=jnp.int32), indexing="ij")
    coords = jnp.tile(jnp.stack([yy.reshape(-1), xx.reshape(-1)], axis=0),
                      (1, TB))                                    # (2, L)

    # Conv weights flattened to (oc, 9*cin), tap-major (row = t*cin + ci) so
    # they match the in-kernel sublane concatenation order; bf16 for the MXU.
    def flat_taps(w):
        o, i = w.shape[0], w.shape[1]
        return (w.reshape(o, i, 9).transpose(0, 2, 1)
                 .reshape(o, 9 * i).astype(jnp.bfloat16))

    w1_flat = flat_taps(conv1_w)
    w2_flat = flat_taps(conv2_w)

    # Fold conv bias + BN (running stats) into one per-channel FMA (f32).
    def fold(bias, g, b, m, v):
        a = g / jnp.sqrt(v + eps)
        return (a.reshape(oc, 1).astype(jnp.float32),
                (b + a * (bias - m)).reshape(oc, 1).astype(jnp.float32))

    a1, b1 = fold(conv1_b, bn1_g, bn1_b, bn1_m, bn1_v)
    a2, b2 = fold(conv2_b, bn2_g, bn2_b, bn2_m, bn2_v)

    flops = int(2 * 9 * n * S * (c_in * oc + oc * oc) + 12 * n * S * oc)
    bytes_accessed = int(2 * c_in * n * S          # pooled bf16 in
                         + 4 * oc * n * S          # f32 out
                         + 8 * L                   # coords
                         + 2 * 9 * oc * (c_in + oc) + 4 * 4 * oc)

    kernel = functools.partial(_down_kernel, hp=hp, wp=wp)

    out_flat = pl.pallas_call(
        kernel,
        out_shape=jax.ShapeDtypeStruct((oc, n * S), x.dtype),
        grid=(nb,),
        in_specs=[
            pl.BlockSpec((c_in, L), lambda i: (0, i)),        # pooled activations
            pl.BlockSpec((2, L), lambda i: (0, 0)),           # per-lane coords
            pl.BlockSpec((oc, 9 * c_in), lambda i: (0, 0)),   # conv1 taps (fused)
            pl.BlockSpec((oc, 1), lambda i: (0, 0)),          # conv1 BN scale
            pl.BlockSpec((oc, 1), lambda i: (0, 0)),          # conv1 BN shift
            pl.BlockSpec((oc, 9 * oc), lambda i: (0, 0)),     # conv2 taps (fused)
            pl.BlockSpec((oc, 1), lambda i: (0, 0)),          # conv2 BN scale
            pl.BlockSpec((oc, 1), lambda i: (0, 0)),          # conv2 BN shift
        ],
        out_specs=pl.BlockSpec((oc, L), lambda i: (0, i)),
        compiler_params=pltpu.CompilerParams(
            dimension_semantics=("parallel",),
            vmem_limit_bytes=32 * 1024 * 1024),
        cost_estimate=pl.CostEstimate(flops=flops, transcendentals=0,
                                      bytes_accessed=bytes_accessed),
    )(pooled, coords, w1_flat, a1, b1, w2_flat, a2, b2)

    # (oc, n*S) -> (n, oc, hp, wp): free metadata/transpose in HBM.
    return out_flat.reshape(oc, n, hp, wp).transpose(1, 0, 2, 3)


def down_ref(x, conv1_w, conv1_b, bn1_g, bn1_b, bn1_m, bn1_v,
             conv2_w, conv2_b, bn2_g, bn2_b, bn2_m, bn2_v, eps=1e-5):
    """Plain-JAX reference mirroring PyTorch Down.forward (BN eval mode)."""
    p = lax.reduce_window(x, -jnp.inf, lax.max,
                          (1, 1, 2, 2), (1, 1, 2, 2), "VALID")

    def conv_bn_relu(z, w, b, g, beta, m, v):
        z = lax.conv_general_dilated(
            z, w, window_strides=(1, 1), padding=((1, 1), (1, 1)),
            dimension_numbers=("NCHW", "OIHW", "NCHW"))
        z = z + b[None, :, None, None]
        z = (z - m[None, :, None, None]) / jnp.sqrt(v[None, :, None, None] + eps)
        z = z * g[None, :, None, None] + beta[None, :, None, None]
        return jnp.maximum(z, 0.0)

    h = conv_bn_relu(p, conv1_w, conv1_b, bn1_g, bn1_b, bn1_m, bn1_v)
    return conv_bn_relu(h, conv2_w, conv2_b, bn2_g, bn2_b, bn2_m, bn2_v)


if __name__ == "__main__":
    # Down(in_ch=4, out_ch=8) on a (4, 4, 16, 16) input -> (4, 8, 8, 8)
    n, c_in, c_out, H, W = 4, 4, 8, 16, 16

    key = jax.random.PRNGKey(0)
    ks = jax.random.split(key, 14)

    x = jax.random.normal(ks[0], (n, c_in, H, W), dtype=jnp.float32)

    conv1_w = 0.1 * jax.random.normal(ks[1], (c_out, c_in, 3, 3), jnp.float32)
    conv1_b = 0.1 * jax.random.normal(ks[2], (c_out,), jnp.float32)
    bn1_g = 1.0 + 0.1 * jax.random.normal(ks[3], (c_out,), jnp.float32)
    bn1_b = 0.1 * jax.random.normal(ks[4], (c_out,), jnp.float32)
    bn1_m = 0.1 * jax.random.normal(ks[5], (c_out,), jnp.float32)
    bn1_v = 1.0 + 0.1 * jax.nn.softplus(jax.random.normal(ks[6], (c_out,), jnp.float32))

    conv2_w = 0.1 * jax.random.normal(ks[7], (c_out, c_out, 3, 3), jnp.float32)
    conv2_b = 0.1 * jax.random.normal(ks[8], (c_out,), jnp.float32)
    bn2_g = 1.0 + 0.1 * jax.random.normal(ks[9], (c_out,), jnp.float32)
    bn2_b = 0.1 * jax.random.normal(ks[10], (c_out,), jnp.float32)
    bn2_m = 0.1 * jax.random.normal(ks[11], (c_out,), jnp.float32)
    bn2_v = 1.0 + 0.1 * jax.nn.softplus(jax.random.normal(ks[12], (c_out,), jnp.float32))

    out = down_forward(x, conv1_w, conv1_b, bn1_g, bn1_b, bn1_m, bn1_v,
                       conv2_w, conv2_b, bn2_g, bn2_b, bn2_m, bn2_v)
    out = jax.block_until_ready(out)

    ref = down_ref(x, conv1_w, conv1_b, bn1_g, bn1_b, bn1_m, bn1_v,
                   conv2_w, conv2_b, bn2_g, bn2_b, bn2_m, bn2_v)

    assert out.shape == (n, c_out, H // 2, W // 2)
    # bf16 activation/weight stream (f32 accumulation) -> loosened tolerance.
    assert jnp.allclose(out, ref, atol=3e-2, rtol=3e-2), "mismatch vs reference"

    print("KERNEL_OK")
</pallas_src>

<mosaic_0001>
module attributes {stable_mosaic.version = 11 : i64} {
  func.func @_down_kernel(%arg0: i32, %arg1: memref<4x256xbf16, #tpu.memory_space<vmem>>, %arg2: memref<2x256xi32, #tpu.memory_space<vmem>>, %arg3: memref<8x36xbf16, #tpu.memory_space<vmem>>, %arg4: memref<8x1xf32, #tpu.memory_space<vmem>>, %arg5: memref<8x1xf32, #tpu.memory_space<vmem>>, %arg6: memref<8x72xbf16, #tpu.memory_space<vmem>>, %arg7: memref<8x1xf32, #tpu.memory_space<vmem>>, %arg8: memref<8x1xf32, #tpu.memory_space<vmem>>, %arg9: memref<8x256xf32, #tpu.memory_space<vmem>>) attributes {dimension_semantics = [#tpu.dimension_semantics<parallel>], iteration_bounds = array<i64: 1>, scalar_prefetch = 0 : i64, scratch_operands = 0 : i64, tpu.core_type = #tpu.core_type<tc>, window_params = [{transform_indices = @transform_0, window_bounds = array<i64: 4, 256>}, {pipeline_mode = #tpu.pipeline_mode<synchronous>, transform_indices = @transform_1, window_bounds = array<i64: 2, 256>}, {pipeline_mode = #tpu.pipeline_mode<synchronous>, transform_indices = @transform_2, window_bounds = array<i64: 8, 36>}, {pipeline_mode = #tpu.pipeline_mode<synchronous>, transform_indices = @transform_3, window_bounds = array<i64: 8, 1>}, {pipeline_mode = #tpu.pipeline_mode<synchronous>, transform_indices = @transform_4, window_bounds = array<i64: 8, 1>}, {pipeline_mode = #tpu.pipeline_mode<synchronous>, transform_indices = @transform_5, window_bounds = array<i64: 8, 72>}, {pipeline_mode = #tpu.pipeline_mode<synchronous>, transform_indices = @transform_6, window_bounds = array<i64: 8, 1>}, {pipeline_mode = #tpu.pipeline_mode<synchronous>, transform_indices = @transform_7, window_bounds = array<i64: 8, 1>}, {transform_indices = @transform_8, window_bounds = array<i64: 8, 256>}]} {
    %c0 = arith.constant 0 : index
    %c0_0 = arith.constant 0 : index
    %0 = vector.load %arg1[%c0, %c0_0] : memref<4x256xbf16, #tpu.memory_space<vmem>>, vector<4x256xbf16>
    %1 = arith.extf %0 : vector<4x256xbf16> to vector<4x256xf32>
    %c0_1 = arith.constant 0 : index
    %c0_2 = arith.constant 0 : index
    %2 = vector.load %arg2[%c0_1, %c0_2] : memref<2x256xi32, #tpu.memory_space<vmem>>, vector<1x256xi32>
    %c1 = arith.constant 1 : index
    %c0_3 = arith.constant 0 : index
    %3 = vector.load %arg2[%c1, %c0_3] : memref<2x256xi32, #tpu.memory_space<vmem>>, vector<1x256xi32>
    %c-1_i32 = arith.constant -1 : i32
    %4 = vector.broadcast %c-1_i32 : i32 to vector<1x256xi32>
    %5 = arith.addi %2, %4 : vector<1x256xi32>
    %c0_i32 = arith.constant 0 : i32
    %6 = vector.broadcast %c0_i32 : i32 to vector<1x256xi32>
    %7 = arith.cmpi sge, %5, %6 : vector<1x256xi32>
    %c-1_i32_4 = arith.constant -1 : i32
    %8 = vector.broadcast %c-1_i32_4 : i32 to vector<1x256xi32>
    %9 = arith.addi %2, %8 : vector<1x256xi32>
    %c8_i32 = arith.constant 8 : i32
    %10 = vector.broadcast %c8_i32 : i32 to vector<1x256xi32>
    %11 = arith.cmpi slt, %9, %10 : vector<1x256xi32>
    %12 = arith.andi %7, %11 : vector<1x256xi1>
    %c-1_i32_5 = arith.constant -1 : i32
    %13 = vector.broadcast %c-1_i32_5 : i32 to vector<1x256xi32>
    %14 = arith.addi %3, %13 : vector<1x256xi32>
    %c0_i32_6 = arith.constant 0 : i32
    %15 = vector.broadcast %c0_i32_6 : i32 to vector<1x256xi32>
    %16 = arith.cmpi sge, %14, %15 : vector<1x256xi32>
    %17 = arith.andi %12, %16 : vector<1x256xi1>
    %c-1_i32_7 = arith.constant -1 : i32
    %18 = vector.broadcast %c-1_i32_7 : i32 to vector<1x256xi32>
    %19 = arith.addi %3, %18 : vector<1x256xi32>
    %c8_i32_8 = arith.constant 8 : i32
    %20 = vector.broadcast %c8_i32_8 : i32 to vector<1x256xi32>
    %21 = arith.cmpi slt, %19, %20 : vector<1x256xi32>
    %22 = arith.andi %17, %21 : vector<1x256xi1>
    %c-1_i32_9 = arith.constant -1 : i32
    %23 = vector.broadcast %c-1_i32_9 : i32 to vector<1x256xi32>
    %24 = arith.addi %2, %23 : vector<1x256xi32>
    %c0_i32_10 = arith.constant 0 : i32
    %25 = vector.broadcast %c0_i32_10 : i32 to vector<1x256xi32>
    %26 = arith.cmpi sge, %24, %25 : vector<1x256xi32>
    %c-1_i32_11 = arith.constant -1 : i32
    %27 = vector.broadcast %c-1_i32_11 : i32 to vector<1x256xi32>
    %28 = arith.addi %2, %27 : vector<1x256xi32>
    %c8_i32_12 = arith.constant 8 : i32
    %29 = vector.broadcast %c8_i32_12 : i32 to vector<1x256xi32>
    %30 = arith.cmpi slt, %28, %29 : vector<1x256xi32>
    %31 = arith.andi %26, %30 : vector<1x256xi1>
    %c0_i32_13 = arith.constant 0 : i32
    %32 = vector.broadcast %c0_i32_13 : i32 to vector<1x256xi32>
    %33 = arith.addi %3, %32 : vector<1x256xi32>
    %c0_i32_14 = arith.constant 0 : i32
    %34 = vector.broadcast %c0_i32_14 : i32 to vector<1x256xi32>
    %35 = arith.cmpi sge, %33, %34 : vector<1x256xi32>
    %36 = arith.andi %31, %35 : vector<1x256xi1>
    %c0_i32_15 = arith.constant 0 : i32
    %37 = vector.broadcast %c0_i32_15 : i32 to vector<1x256xi32>
    %38 = arith.addi %3, %37 : vector<1x256xi32>
    %c8_i32_16 = arith.constant 8 : i32
    %39 = vector.broadcast %c8_i32_16 : i32 to vector<1x256xi32>
    %40 = arith.cmpi slt, %38, %39 : vector<1x256xi32>
    %41 = arith.andi %36, %40 : vector<1x256xi1>
    %c-1_i32_17 = arith.constant -1 : i32
    %42 = vector.broadcast %c-1_i32_17 : i32 to vector<1x256xi32>
    %43 = arith.addi %2, %42 : vector<1x256xi32>
    %c0_i32_18 = arith.constant 0 : i32
    %44 = vector.broadcast %c0_i32_18 : i32 to vector<1x256xi32>
    %45 = arith.cmpi sge, %43, %44 : vector<1x256xi32>
    %c-1_i32_19 = arith.constant -1 : i32
    %46 = vector.broadcast %c-1_i32_19 : i32 to vector<1x256xi32>
    %47 = arith.addi %2, %46 : vector<1x256xi32>
    %c8_i32_20 = arith.constant 8 : i32
    %48 = vector.broadcast %c8_i32_20 : i32 to vector<1x256xi32>
    %49 = arith.cmpi slt, %47, %48 : vector<1x256xi32>
    %50 = arith.andi %45, %49 : vector<1x256xi1>
    %c1_i32 = arith.constant 1 : i32
    %51 = vector.broadcast %c1_i32 : i32 to vector<1x256xi32>
    %52 = arith.addi %3, %51 : vector<1x256xi32>
    %c0_i32_21 = arith.constant 0 : i32
    %53 = vector.broadcast %c0_i32_21 : i32 to vector<1x256xi32>
    %54 = arith.cmpi sge, %52, %53 : vector<1x256xi32>
    %55 = arith.andi %50, %54 : vector<1x256xi1>
    %c1_i32_22 = arith.constant 1 : i32
    %56 = vector.broadcast %c1_i32_22 : i32 to vector<1x256xi32>
    %57 = arith.addi %3, %56 : vector<1x256xi32>
    %c8_i32_23 = arith.constant 8 : i32
    %58 = vector.broadcast %c8_i32_23 : i32 to vector<1x256xi32>
    %59 = arith.cmpi slt, %57, %58 : vector<1x256xi32>
    %60 = arith.andi %55, %59 : vector<1x256xi1>
    %c0_i32_24 = arith.constant 0 : i32
    %61 = vector.broadcast %c0_i32_24 : i32 to vector<1x256xi32>
    %62 = arith.addi %2, %61 : vector<1x256xi32>
    %c0_i32_25 = arith.constant 0 : i32
    %63 = vector.broadcast %c0_i32_25 : i32 to vector<1x256xi32>
    %64 = arith.cmpi sge, %62, %63 : vector<1x256xi32>
    %c0_i32_26 = arith.constant 0 : i32
    %65 = vector.broadcast %c0_i32_26 : i32 to vector<1x256xi32>
    %66 = arith.addi %2, %65 : vector<1x256xi32>
    %c8_i32_27 = arith.constant 8 : i32
    %67 = vector.broadcast %c8_i32_27 : i32 to vector<1x256xi32>
    %68 = arith.cmpi slt, %66, %67 : vector<1x256xi32>
    %69 = arith.andi %64, %68 : vector<1x256xi1>
    %c-1_i32_28 = arith.constant -1 : i32
    %70 = vector.broadcast %c-1_i32_28 : i32 to vector<1x256xi32>
    %71 = arith.addi %3, %70 : vector<1x256xi32>
    %c0_i32_29 = arith.constant 0 : i32
    %72 = vector.broadcast %c0_i32_29 : i32 to vector<1x256xi32>
    %73 = arith.cmpi sge, %71, %72 : vector<1x256xi32>
    %74 = arith.andi %69, %73 : vector<1x256xi1>
    %c-1_i32_30 = arith.constant -1 : i32
    %75 = vector.broadcast %c-1_i32_30 : i32 to vector<1x256xi32>
    %76 = arith.addi %3, %75 : vector<1x256xi32>
    %c8_i32_31 = arith.constant 8 : i32
    %77 = vector.broadcast %c8_i32_31 : i32 to vector<1x256xi32>
    %78 = arith.cmpi slt, %76, %77 : vector<1x256xi32>
    %79 = arith.andi %74, %78 : vector<1x256xi1>
    %c0_i32_32 = arith.constant 0 : i32
    %80 = vector.broadcast %c0_i32_32 : i32 to vector<1x256xi32>
    %81 = arith.addi %2, %80 : vector<1x256xi32>
    %c0_i32_33 = arith.constant 0 : i32
    %82 = vector.broadcast %c0_i32_33 : i32 to vector<1x256xi32>
    %83 = arith.cmpi sge, %81, %82 : vector<1x256xi32>
    %c0_i32_34 = arith.constant 0 : i32
    %84 = vector.broadcast %c0_i32_34 : i32 to vector<1x256xi32>
    %85 = arith.addi %2, %84 : vector<1x256xi32>
    %c8_i32_35 = arith.constant 8 : i32
    %86 = vector.broadcast %c8_i32_35 : i32 to vector<1x256xi32>
    %87 = arith.cmpi slt, %85, %86 : vector<1x256xi32>
    %88 = arith.andi %83, %87 : vector<1x256xi1>
    %c1_i32_36 = arith.constant 1 : i32
    %89 = vector.broadcast %c1_i32_36 : i32 to vector<1x256xi32>
    %90 = arith.addi %3, %89 : vector<1x256xi32>
    %c0_i32_37 = arith.constant 0 : i32
    %91 = vector.broadcast %c0_i32_37 : i32 to vector<1x256xi32>
    %92 = arith.cmpi sge, %90, %91 : vector<1x256xi32>
    %93 = arith.andi %88, %92 : vector<1x256xi1>
    %c1_i32_38 = arith.constant 1 : i32
    %94 = vector.broadcast %c1_i32_38 : i32 to vector<1x256xi32>
    %95 = arith.addi %3, %94 : vector<1x256xi32>
    %c8_i32_39 = arith.constant 8 : i32
    %96 = vector.broadcast %c8_i32_39 : i32 to vector<1x256xi32>
    %97 = arith.cmpi slt, %95, %96 : vector<1x256xi32>
    %98 = arith.andi %93, %97 : vector<1x256xi1>
    %c1_i32_40 = arith.constant 1 : i32
    %99 = vector.broadcast %c1_i32_40 : i32 to vector<1x256xi32>
    %100 = arith.addi %2, %99 : vector<1x256xi32>
    %c0_i32_41 = arith.constant 0 : i32
    %101 = vector.broadcast %c0_i32_41 : i32 to vector<1x256xi32>
    %102 = arith.cmpi sge, %100, %101 : vector<1x256xi32>
    %c1_i32_42 = arith.constant 1 : i32
    %103 = vector.broadcast %c1_i32_42 : i32 to vector<1x256xi32>
    %104 = arith.addi %2, %103 : vector<1x256xi32>
    %c8_i32_43 = arith.constant 8 : i32
    %105 = vector.broadcast %c8_i32_43 : i32 to vector<1x256xi32>
    %106 = arith.cmpi slt, %104, %105 : vector<1x256xi32>
    %107 = arith.andi %102, %106 : vector<1x256xi1>
    %c-1_i32_44 = arith.constant -1 : i32
    %108 = vector.broadcast %c-1_i32_44 : i32 to vector<1x256xi32>
    %109 = arith.addi %3, %108 : vector<1x256xi32>
    %c0_i32_45 = arith.constant 0 : i32
    %110 = vector.broadcast %c0_i32_45 : i32 to vector<1x256xi32>
    %111 = arith.cmpi sge, %109, %110 : vector<1x256xi32>
    %112 = arith.andi %107, %111 : vector<1x256xi1>
    %c-1_i32_46 = arith.constant -1 : i32
    %113 = vector.broadcast %c-1_i32_46 : i32 to vector<1x256xi32>
    %114 = arith.addi %3, %113 : vector<1x256xi32>
    %c8_i32_47 = arith.constant 8 : i32
    %115 = vector.broadcast %c8_i32_47 : i32 to vector<1x256xi32>
    %116 = arith.cmpi slt, %114, %115 : vector<1x256xi32>
    %117 = arith.andi %112, %116 : vector<1x256xi1>
    %c1_i32_48 = arith.constant 1 : i32
    %118 = vector.broadcast %c1_i32_48 : i32 to vector<1x256xi32>
    %119 = arith.addi %2, %118 : vector<1x256xi32>
    %c0_i32_49 = arith.constant 0 : i32
    %120 = vector.broadcast %c0_i32_49 : i32 to vector<1x256xi32>
    %121 = arith.cmpi sge, %119, %120 : vector<1x256xi32>
    %c1_i32_50 = arith.constant 1 : i32
    %122 = vector.broadcast %c1_i32_50 : i32 to vector<1x256xi32>
    %123 = arith.addi %2, %122 : vector<1x256xi32>
    %c8_i32_51 = arith.constant 8 : i32
    %124 = vector.broadcast %c8_i32_51 : i32 to vector<1x256xi32>
    %125 = arith.cmpi slt, %123, %124 : vector<1x256xi32>
    %126 = arith.andi %121, %125 : vector<1x256xi1>
    %c0_i32_52 = arith.constant 0 : i32
    %127 = vector.broadcast %c0_i32_52 : i32 to vector<1x256xi32>
    %128 = arith.addi %3, %127 : vector<1x256xi32>
    %c0_i32_53 = arith.constant 0 : i32
    %129 = vector.broadcast %c0_i32_53 : i32 to vector<1x256xi32>
    %130 = arith.cmpi sge, %128, %129 : vector<1x256xi32>
    %131 = arith.andi %126, %130 : vector<1x256xi1>
    %c0_i32_54 = arith.constant 0 : i32
    %132 = vector.broadcast %c0_i32_54 : i32 to vector<1x256xi32>
    %133 = arith.addi %3, %132 : vector<1x256xi32>
    %c8_i32_55 = arith.constant 8 : i32
    %134 = vector.broadcast %c8_i32_55 : i32 to vector<1x256xi32>
    %135 = arith.cmpi slt, %133, %134 : vector<1x256xi32>
    %136 = arith.andi %131, %135 : vector<1x256xi1>
    %c1_i32_56 = arith.constant 1 : i32
    %137 = vector.broadcast %c1_i32_56 : i32 to vector<1x256xi32>
    %138 = arith.addi %2, %137 : vector<1x256xi32>
    %c0_i32_57 = arith.constant 0 : i32
    %139 = vector.broadcast %c0_i32_57 : i32 to vector<1x256xi32>
    %140 = arith.cmpi sge, %138, %139 : vector<1x256xi32>
    %c1_i32_58 = arith.constant 1 : i32
    %141 = vector.broadcast %c1_i32_58 : i32 to vector<1x256xi32>
    %142 = arith.addi %2, %141 : vector<1x256xi32>
    %c8_i32_59 = arith.constant 8 : i32
    %143 = vector.broadcast %c8_i32_59 : i32 to vector<1x256xi32>
    %144 = arith.cmpi slt, %142, %143 : vector<1x256xi32>
    %145 = arith.andi %140, %144 : vector<1x256xi1>
    %c1_i32_60 = arith.constant 1 : i32
    %146 = vector.broadcast %c1_i32_60 : i32 to vector<1x256xi32>
    %147 = arith.addi %3, %146 : vector<1x256xi32>
    %c0_i32_61 = arith.constant 0 : i32
    %148 = vector.broadcast %c0_i32_61 : i32 to vector<1x256xi32>
    %149 = arith.cmpi sge, %147, %148 : vector<1x256xi32>
    %150 = arith.andi %145, %149 : vector<1x256xi1>
    %c1_i32_62 = arith.constant 1 : i32
    %151 = vector.broadcast %c1_i32_62 : i32 to vector<1x256xi32>
    %152 = arith.addi %3, %151 : vector<1x256xi32>
    %c8_i32_63 = arith.constant 8 : i32
    %153 = vector.broadcast %c8_i32_63 : i32 to vector<1x256xi32>
    %154 = arith.cmpi slt, %152, %153 : vector<1x256xi32>
    %155 = arith.andi %150, %154 : vector<1x256xi1>
    %c0_64 = arith.constant 0 : index
    %c0_65 = arith.constant 0 : index
    %156 = vector.load %arg3[%c0_64, %c0_65] : memref<8x36xbf16, #tpu.memory_space<vmem>>, vector<8x36xbf16>
    %c0_66 = arith.constant 0 : index
    %c0_67 = arith.constant 0 : index
    %157 = vector.load %arg4[%c0_66, %c0_67] : memref<8x1xf32, #tpu.memory_space<vmem>>, vector<8x1xf32>
    %c0_68 = arith.constant 0 : index
    %c0_69 = arith.constant 0 : index
    %158 = vector.load %arg5[%c0_68, %c0_69] : memref<8x1xf32, #tpu.memory_space<vmem>>, vector<8x1xf32>
    %159 = vector.extract_strided_slice %1 {offsets = [0, 247], sizes = [4, 9], strides = [1, 1]} : vector<4x256xf32> to vector<4x9xf32>
    %160 = vector.extract_strided_slice %1 {offsets = [0, 0], sizes = [4, 247], strides = [1, 1]} : vector<4x256xf32> to vector<4x247xf32>
    %161 = tpu.concatenate %159, %160 in 1 : vector<4x9xf32>, vector<4x247xf32> -> vector<4x256xf32>
    %cst = arith.constant 0.000000e+00 : f32
    %162 = vector.shape_cast %22 : vector<1x256xi1> to vector<1x256xi1>
    %163 = vector.broadcast %162 : vector<1x256xi1> to vector<4x256xi1>
    %164 = vector.broadcast %cst : f32 to vector<4x256xf32>
    %165 = arith.select %163, %161, %164 : vector<4x256xi1>, vector<4x256xf32>
    %166 = vector.extract_strided_slice %1 {offsets = [0, 248], sizes = [4, 8], strides = [1, 1]} : vector<4x256xf32> to vector<4x8xf32>
    %167 = vector.extract_strided_slice %1 {offsets = [0, 0], sizes = [4, 248], strides = [1, 1]} : vector<4x256xf32> to vector<4x248xf32>
    %168 = tpu.concatenate %166, %167 in 1 : vector<4x8xf32>, vector<4x248xf32> -> vector<4x256xf32>
    %cst_70 = arith.constant 0.000000e+00 : f32
    %169 = vector.shape_cast %41 : vector<1x256xi1> to vector<1x256xi1>
    %170 = vector.broadcast %169 : vector<1x256xi1> to vector<4x256xi1>
    %171 = vector.broadcast %cst_70 : f32 to vector<4x256xf32>
    %172 = arith.select %170, %168, %171 : vector<4x256xi1>, vector<4x256xf32>
    %173 = vector.extract_strided_slice %1 {offsets = [0, 249], sizes = [4, 7], strides = [1, 1]} : vector<4x256xf32> to vector<4x7xf32>
    %174 = vector.extract_strided_slice %1 {offsets = [0, 0], sizes = [4, 249], strides = [1, 1]} : vector<4x256xf32> to vector<4x249xf32>
    %175 = tpu.concatenate %173, %174 in 1 : vector<4x7xf32>, vector<4x249xf32> -> vector<4x256xf32>
    %cst_71 = arith.constant 0.000000e+00 : f32
    %176 = vector.shape_cast %60 : vector<1x256xi1> to vector<1x256xi1>
    %177 = vector.broadcast %176 : vector<1x256xi1> to vector<4x256xi1>
    %178 = vector.broadcast %cst_71 : f32 to vector<4x256xf32>
    %179 = arith.select %177, %175, %178 : vector<4x256xi1>, vector<4x256xf32>
    %180 = vector.extract_strided_slice %1 {offsets = [0, 255], sizes = [4, 1], strides = [1, 1]} : vector<4x256xf32> to vector<4x1xf32>
    %181 = vector.extract_strided_slice %1 {offsets = [0, 0], sizes = [4, 255], strides = [1, 1]} : vector<4x256xf32> to vector<4x255xf32>
    %182 = tpu.concatenate %180, %181 in 1 : vector<4x1xf32>, vector<4x255xf32> -> vector<4x256xf32>
    %cst_72 = arith.constant 0.000000e+00 : f32
    %183 = vector.shape_cast %79 : vector<1x256xi1> to vector<1x256xi1>
    %184 = vector.broadcast %183 : vector<1x256xi1> to vector<4x256xi1>
    %185 = vector.broadcast %cst_72 : f32 to vector<4x256xf32>
    %186 = arith.select %184, %182, %185 : vector<4x256xi1>, vector<4x256xf32>
    %187 = vector.extract_strided_slice %1 {offsets = [0, 1], sizes = [4, 255], strides = [1, 1]} : vector<4x256xf32> to vector<4x255xf32>
    %188 = vector.extract_strided_slice %1 {offsets = [0, 0], sizes = [4, 1], strides = [1, 1]} : vector<4x256xf32> to vector<4x1xf32>
    %189 = tpu.concatenate %187, %188 in 1 : vector<4x255xf32>, vector<4x1xf32> -> vector<4x256xf32>
    %cst_73 = arith.constant 0.000000e+00 : f32
    %190 = vector.shape_cast %98 : vector<1x256xi1> to vector<1x256xi1>
    %191 = vector.broadcast %190 : vector<1x256xi1> to vector<4x256xi1>
    %192 = vector.broadcast %cst_73 : f32 to vector<4x256xf32>
    %193 = arith.select %191, %189, %192 : vector<4x256xi1>, vector<4x256xf32>
    %194 = vector.extract_strided_slice %1 {offsets = [0, 7], sizes = [4, 249], strides = [1, 1]} : vector<4x256xf32> to vector<4x249xf32>
    %195 = vector.extract_strided_slice %1 {offsets = [0, 0], sizes = [4, 7], strides = [1, 1]} : vector<4x256xf32> to vector<4x7xf32>
    %196 = tpu.concatenate %194, %195 in 1 : vector<4x249xf32>, vector<4x7xf32> -> vector<4x256xf32>
    %cst_74 = arith.constant 0.000000e+00 : f32
    %197 = vector.shape_cast %117 : vector<1x256xi1> to vector<1x256xi1>
    %198 = vector.broadcast %197 : vector<1x256xi1> to vector<4x256xi1>
    %199 = vector.broadcast %cst_74 : f32 to vector<4x256xf32>
    %200 = arith.select %198, %196, %199 : vector<4x256xi1>, vector<4x256xf32>
    %201 = vector.extract_strided_slice %1 {offsets = [0, 8], sizes = [4, 248], strides = [1, 1]} : vector<4x256xf32> to vector<4x248xf32>
    %202 = vector.extract_strided_slice %1 {offsets = [0, 0], sizes = [4, 8], strides = [1, 1]} : vector<4x256xf32> to vector<4x8xf32>
    %203 = tpu.concatenate %201, %202 in 1 : vector<4x248xf32>, vector<4x8xf32> -> vector<4x256xf32>
    %cst_75 = arith.constant 0.000000e+00 : f32
    %204 = vector.shape_cast %136 : vector<1x256xi1> to vector<1x256xi1>
    %205 = vector.broadcast %204 : vector<1x256xi1> to vector<4x256xi1>
    %206 = vector.broadcast %cst_75 : f32 to vector<4x256xf32>
    %207 = arith.select %205, %203, %206 : vector<4x256xi1>, vector<4x256xf32>
    %208 = vector.extract_strided_slice %1 {offsets = [0, 9], sizes = [4, 247], strides = [1, 1]} : vector<4x256xf32> to vector<4x247xf32>
    %209 = vector.extract_strided_slice %1 {offsets = [0, 0], sizes = [4, 9], strides = [1, 1]} : vector<4x256xf32> to vector<4x9xf32>
    %210 = tpu.concatenate %208, %209 in 1 : vector<4x247xf32>, vector<4x9xf32> -> vector<4x256xf32>
    %cst_76 = arith.constant 0.000000e+00 : f32
    %211 = vector.shape_cast %155 : vector<1x256xi1> to vector<1x256xi1>
    %212 = vector.broadcast %211 : vector<1x256xi1> to vector<4x256xi1>
    %213 = vector.broadcast %cst_76 : f32 to vector<4x256xf32>
    %214 = arith.select %212, %210, %213 : vector<4x256xi1>, vector<4x256xf32>
    %215 = tpu.concatenate %165, %172, %179, %186, %1, %193, %200, %207, %214 in 0 : vector<4x256xf32>, vector<4x256xf32>, vector<4x256xf32>, vector<4x256xf32>, vector<4x256xf32>, vector<4x256xf32>, vector<4x256xf32>, vector<4x256xf32>, vector<4x256xf32> -> vector<36x256xf32>
    %216 = arith.truncf %215 : vector<36x256xf32> to vector<36x256xbf16>
    %cst_77 = arith.constant dense<0.000000e+00> : vector<8x256xf32>
    %217 = tpu.matmul %156, %216, %cst_77 {dimension_numbers = #tpu.dot_dimension_numbers<[1], [0], [0], [1], [0, 0, 1, 1], [], []>} : vector<8x36xbf16>, vector<36x256xbf16>, vector<8x256xf32> -> vector<8x256xf32>
    %218 = vector.broadcast %157 : vector<8x1xf32> to vector<8x256xf32>
    %219 = arith.mulf %217, %218 : vector<8x256xf32>
    %220 = vector.broadcast %158 : vector<8x1xf32> to vector<8x256xf32>
    %221 = arith.addf %219, %220 : vector<8x256xf32>
    %cst_78 = arith.constant 0.000000e+00 : f32
    %222 = vector.broadcast %cst_78 : f32 to vector<8x256xf32>
    %223 = arith.maximumf %221, %222 : vector<8x256xf32>
    %c0_79 = arith.constant 0 : index
    %c0_80 = arith.constant 0 : index
    %224 = vector.load %arg6[%c0_79, %c0_80] : memref<8x72xbf16, #tpu.memory_space<vmem>>, vector<8x72xbf16>
    %c0_81 = arith.constant 0 : index
    %c0_82 = arith.constant 0 : index
    %225 = vector.load %arg7[%c0_81, %c0_82] : memref<8x1xf32, #tpu.memory_space<vmem>>, vector<8x1xf32>
    %c0_83 = arith.constant 0 : index
    %c0_84 = arith.constant 0 : index
    %226 = vector.load %arg8[%c0_83, %c0_84] : memref<8x1xf32, #tpu.memory_space<vmem>>, vector<8x1xf32>
    %227 = vector.extract_strided_slice %223 {offsets = [0, 247], sizes = [8, 9], strides = [1, 1]} : vector<8x256xf32> to vector<8x9xf32>
    %228 = vector.extract_strided_slice %223 {offsets = [0, 0], sizes = [8, 247], strides = [1, 1]} : vector<8x256xf32> to vector<8x247xf32>
    %229 = tpu.concatenate %227, %228 in 1 : vector<8x9xf32>, vector<8x247xf32> -> vector<8x256xf32>
    %cst_85 = arith.constant 0.000000e+00 : f32
    %230 = vector.shape_cast %22 : vector<1x256xi1> to vector<1x256xi1>
    %231 = vector.broadcast %230 : vector<1x256xi1> to vector<8x256xi1>
    %232 = vector.broadcast %cst_85 : f32 to vector<8x256xf32>
    %233 = arith.select %231, %229, %232 : vector<8x256xi1>, vector<8x256xf32>
    %234 = vector.extract_strided_slice %223 {offsets = [0, 248], sizes = [8, 8], strides = [1, 1]} : vector<8x256xf32> to vector<8x8xf32>
    %235 = vector.extract_strided_slice %223 {offsets = [0, 0], sizes = [8, 248], strides = [1, 1]} : vector<8x256xf32> to vector<8x248xf32>
    %236 = tpu.concatenate %234, %235 in 1 : vector<8x8xf32>, vector<8x248xf32> -> vector<8x256xf32>
    %cst_86 = arith.constant 0.000000e+00 : f32
    %237 = vector.shape_cast %41 : vector<1x256xi1> to vector<1x256xi1>
    %238 = vector.broadcast %237 : vector<1x256xi1> to vector<8x256xi1>
    %239 = vector.broadcast %cst_86 : f32 to vector<8x256xf32>
    %240 = arith.select %238, %236, %239 : vector<8x256xi1>, vector<8x256xf32>
    %241 = vector.extract_strided_slice %223 {offsets = [0, 249], sizes = [8, 7], strides = [1, 1]} : vector<8x256xf32> to vector<8x7xf32>
    %242 = vector.extract_strided_slice %223 {offsets = [0, 0], sizes = [8, 249], strides = [1, 1]} : vector<8x256xf32> to vector<8x249xf32>
    %243 = tpu.concatenate %241, %242 in 1 : vector<8x7xf32>, vector<8x249xf32> -> vector<8x256xf32>
    %cst_87 = arith.constant 0.000000e+00 : f32
    %244 = vector.shape_cast %60 : vector<1x256xi1> to vector<1x256xi1>
    %245 = vector.broadcast %244 : vector<1x256xi1> to vector<8x256xi1>
    %246 = vector.broadcast %cst_87 : f32 to vector<8x256xf32>
    %247 = arith.select %245, %243, %246 : vector<8x256xi1>, vector<8x256xf32>
    %248 = vector.extract_strided_slice %223 {offsets = [0, 255], sizes = [8, 1], strides = [1, 1]} : vector<8x256xf32> to vector<8x1xf32>
    %249 = vector.extract_strided_slice %223 {offsets = [0, 0], sizes = [8, 255], strides = [1, 1]} : vector<8x256xf32> to vector<8x255xf32>
    %250 = tpu.concatenate %248, %249 in 1 : vector<8x1xf32>, vector<8x255xf32> -> vector<8x256xf32>
    %cst_88 = arith.constant 0.000000e+00 : f32
    %251 = vector.shape_cast %79 : vector<1x256xi1> to vector<1x256xi1>
    %252 = vector.broadcast %251 : vector<1x256xi1> to vector<8x256xi1>
    %253 = vector.broadcast %cst_88 : f32 to vector<8x256xf32>
    %254 = arith.select %252, %250, %253 : vector<8x256xi1>, vector<8x256xf32>
    %255 = vector.extract_strided_slice %223 {offsets = [0, 1], sizes = [8, 255], strides = [1, 1]} : vector<8x256xf32> to vector<8x255xf32>
    %256 = vector.extract_strided_slice %223 {offsets = [0, 0], sizes = [8, 1], strides = [1, 1]} : vector<8x256xf32> to vector<8x1xf32>
    %257 = tpu.concatenate %255, %256 in 1 : vector<8x255xf32>, vector<8x1xf32> -> vector<8x256xf32>
    %cst_89 = arith.constant 0.000000e+00 : f32
    %258 = vector.shape_cast %98 : vector<1x256xi1> to vector<1x256xi1>
    %259 = vector.broadcast %258 : vector<1x256xi1> to vector<8x256xi1>
    %260 = vector.broadcast %cst_89 : f32 to vector<8x256xf32>
    %261 = arith.select %259, %257, %260 : vector<8x256xi1>, vector<8x256xf32>
    %262 = vector.extract_strided_slice %223 {offsets = [0, 7], sizes = [8, 249], strides = [1, 1]} : vector<8x256xf32> to vector<8x249xf32>
    %263 = vector.extract_strided_slice %223 {offsets = [0, 0], sizes = [8, 7], strides = [1, 1]} : vector<8x256xf32> to vector<8x7xf32>
    %264 = tpu.concatenate %262, %263 in 1 : vector<8x249xf32>, vector<8x7xf32> -> vector<8x256xf32>
    %cst_90 = arith.constant 0.000000e+00 : f32
    %265 = vector.shape_cast %117 : vector<1x256xi1> to vector<1x256xi1>
    %266 = vector.broadcast %265 : vector<1x256xi1> to vector<8x256xi1>
    %267 = vector.broadcast %cst_90 : f32 to vector<8x256xf32>
    %268 = arith.select %266, %264, %267 : vector<8x256xi1>, vector<8x256xf32>
    %269 = vector.extract_strided_slice %223 {offsets = [0, 8], sizes = [8, 248], strides = [1, 1]} : vector<8x256xf32> to vector<8x248xf32>
    %270 = vector.extract_strided_slice %223 {offsets = [0, 0], sizes = [8, 8], strides = [1, 1]} : vector<8x256xf32> to vector<8x8xf32>
    %271 = tpu.concatenate %269, %270 in 1 : vector<8x248xf32>, vector<8x8xf32> -> vector<8x256xf32>
    %cst_91 = arith.constant 0.000000e+00 : f32
    %272 = vector.shape_cast %136 : vector<1x256xi1> to vector<1x256xi1>
    %273 = vector.broadcast %272 : vector<1x256xi1> to vector<8x256xi1>
    %274 = vector.broadcast %cst_91 : f32 to vector<8x256xf32>
    %275 = arith.select %273, %271, %274 : vector<8x256xi1>, vector<8x256xf32>
    %276 = vector.extract_strided_slice %223 {offsets = [0, 9], sizes = [8, 247], strides = [1, 1]} : vector<8x256xf32> to vector<8x247xf32>
    %277 = vector.extract_strided_slice %223 {offsets = [0, 0], sizes = [8, 9], strides = [1, 1]} : vector<8x256xf32> to vector<8x9xf32>
    %278 = tpu.concatenate %276, %277 in 1 : vector<8x247xf32>, vector<8x9xf32> -> vector<8x256xf32>
    %cst_92 = arith.constant 0.000000e+00 : f32
    %279 = vector.shape_cast %155 : vector<1x256xi1> to vector<1x256xi1>
    %280 = vector.broadcast %279 : vector<1x256xi1> to vector<8x256xi1>
    %281 = vector.broadcast %cst_92 : f32 to vector<8x256xf32>
    %282 = arith.select %280, %278, %281 : vector<8x256xi1>, vector<8x256xf32>
    %283 = tpu.concatenate %233, %240, %247, %254, %223, %261, %268, %275, %282 in 0 : vector<8x256xf32>, vector<8x256xf32>, vector<8x256xf32>, vector<8x256xf32>, vector<8x256xf32>, vector<8x256xf32>, vector<8x256xf32>, vector<8x256xf32>, vector<8x256xf32> -> vector<72x256xf32>
    %284 = arith.truncf %283 : vector<72x256xf32> to vector<72x256xbf16>
    %cst_93 = arith.constant dense<0.000000e+00> : vector<8x256xf32>
    %285 = tpu.matmul %224, %284, %cst_93 {dimension_numbers = #tpu.dot_dimension_numbers<[1], [0], [0], [1], [0, 0, 1, 1], [], []>} : vector<8x72xbf16>, vector<72x256xbf16>, vector<8x256xf32> -> vector<8x256xf32>
    %286 = vector.broadcast %225 : vector<8x1xf32> to vector<8x256xf32>
    %287 = arith.mulf %285, %286 : vector<8x256xf32>
    %288 = vector.broadcast %226 : vector<8x1xf32> to vector<8x256xf32>
    %289 = arith.addf %287, %288 : vector<8x256xf32>
    %cst_94 = arith.constant 0.000000e+00 : f32
    %290 = vector.broadcast %cst_94 : f32 to vector<8x256xf32>
    %291 = arith.maximumf %289, %290 : vector<8x256xf32>
    %c0_95 = arith.constant 0 : index
    %c0_96 = arith.constant 0 : index
    %292 = vector.load %arg9[%c0_95, %c0_96] : memref<8x256xf32, #tpu.memory_space<vmem>>, vector<8x256xf32>
    tpu.vector_store %arg9[%c0_95, %c0_96], %291 {strides = array<i32>} : memref<8x256xf32, #tpu.memory_space<vmem>>, vector<8x256xf32>,
    return
  }
  func.func @transform_0(%arg0: i32) -> (i32, i32) {
    %c0_i32 = arith.constant 0 : i32
    %c0_i32_0 = arith.constant 0 : i32
    return %c0_i32, %arg0 : i32, i32
  }
  func.func @transform_1(%arg0: i32) -> (i32, i32) {
    %c0_i32 = arith.constant 0 : i32
    %c0_i32_0 = arith.constant 0 : i32
    %c0_i32_1 = arith.constant 0 : i32
    return %c0_i32, %c0_i32_0 : i32, i32
  }
  func.func @transform_2(%arg0: i32) -> (i32, i32) {
    %c0_i32 = arith.constant 0 : i32
    %c0_i32_0 = arith.constant 0 : i32
    %c0_i32_1 = arith.constant 0 : i32
    return %c0_i32, %c0_i32_0 : i32, i32
  }
  func.func @transform_3(%arg0: i32) -> (i32, i32) {
    %c0_i32 = arith.constant 0 : i32
    %c0_i32_0 = arith.constant 0 : i32
    %c0_i32_1 = arith.constant 0 : i32
    return %c0_i32, %c0_i32_0 : i32, i32
  }
  func.func @transform_4(%arg0: i32) -> (i32, i32) {
    %c0_i32 = arith.constant 0 : i32
    %c0_i32_0 = arith.constant 0 : i32
    %c0_i32_1 = arith.constant 0 : i32
    return %c0_i32, %c0_i32_0 : i32, i32
  }
  func.func @transform_5(%arg0: i32) -> (i32, i32) {
    %c0_i32 = arith.constant 0 : i32
    %c0_i32_0 = arith.constant 0 : i32
    %c0_i32_1 = arith.constant 0 : i32
    return %c0_i32, %c0_i32_0 : i32, i32
  }
  func.func @transform_6(%arg0: i32) -> (i32, i32) {
    %c0_i32 = arith.constant 0 : i32
    %c0_i32_0 = arith.constant 0 : i32
    %c0_i32_1 = arith.constant 0 : i32
    return %c0_i32, %c0_i32_0 : i32, i32
  }
  func.func @transform_7(%arg0: i32) -> (i32, i32) {
    %c0_i32 = arith.constant 0 : i32
    %c0_i32_0 = arith.constant 0 : i32
    %c0_i32_1 = arith.constant 0 : i32
    return %c0_i32, %c0_i32_0 : i32, i32
  }
  func.func @transform_8(%arg0: i32) -> (i32, i32) {
    %c0_i32 = arith.constant 0 : i32
    %c0_i32_0 = arith.constant 0 : i32
    return %c0_i32, %arg0 : i32, i32
  }
}

</mosaic_0001>

<llo_original>
// kernel: tpu_custom_call.1
$region0: #{tpu_custom_call.1}
  #allocation0 [shape = 'u32[]', space=smem, size = 0x4, offset = 0x4, fixed_abs, tag = 'smem constant byte address 0x4 - core index']
  #allocation1 [shape = 'u32[144,128]{1,0:T(1,128)}', space=vmem, size = 0x12000, scoped, tag = 'internal scratch']
  %s0 = inlined_call_operand.vmem [shape: bf16[4,256], index: 0, kind: input, shape index: {}]
  %s1 = inlined_call_operand.vmem [shape: s32[2,256], index: 1, kind: input, shape index: {}]
  %s2 = inlined_call_operand.vmem [shape: bf16[8,36], index: 2, kind: input, shape index: {}]
  %s3 = inlined_call_operand.vmem [shape: f32[8,1], index: 3, kind: input, shape index: {}]
  %s4 = inlined_call_operand.vmem [shape: f32[8,1], index: 4, kind: input, shape index: {}]
  %s5 = inlined_call_operand.vmem [shape: bf16[8,72], index: 5, kind: input, shape index: {}]
  %s6 = inlined_call_operand.vmem [shape: f32[8,1], index: 6, kind: input, shape index: {}]
  %s7 = inlined_call_operand.vmem [shape: f32[8,1], index: 7, kind: input, shape index: {}]
  %s8 = inlined_call_operand.hbm [shape: f32[8,256], index: 8, kind: output, shape index: {}]
  %s9 = sld [smem:[#allocation0]]
  $region42: #{tpu_custom_call.1} parent=0
    _
  %s11 = ssub.s32 1, %s9
  %s12 = scalar_select 0, %s11, %s9
  $region1: #{tpu_custom_call.1} parent=0
    #allocation2 [shape = 'u8[8192]{0}', space=vmem, size = 0x2000, scoped, tag = 'output window, operand 0, single buffered']
    #allocation3 [shape = 's32[1]{0}', space=sflag, size = 0x4, scoped, tag = 'scoped memory for tpu_custom_call.1']
    %13 = vsyncpa [#allocation3], 0
    // Predicated region
    $region2: #{tpu_custom_call.1} parent=1 // pred_check
      _
    $region3: #{tpu_custom_call.1} parent=1 // pred_check_branch
      %15 = sbr.rel (0) target = $region5
    $region4: #{tpu_custom_call.1} parent=1 // pred_region
      _
    $region5: #{tpu_custom_call.1} parent=1 // pred_fallthru
      _
    // Predicated region
    $region6: #{tpu_custom_call.1} parent=1 // pred_check
      _
    $region7: #{tpu_custom_call.1} parent=1 // pred_check_branch
      %17 = sbr.rel (0) target = $region9
    $region8: #{tpu_custom_call.1} parent=1 // pred_region
      _
    $region9: #{tpu_custom_call.1} parent=1 // pred_fallthru
      _
    // Predicated region
    $region10: #{tpu_custom_call.1} parent=1 // pred_check
      _
    $region11: #{tpu_custom_call.1} parent=1 // pred_check_branch
      %19 = sbr.rel (0) target = $region13
    $region12: #{tpu_custom_call.1} parent=1 // pred_region
      _
    $region13: #{tpu_custom_call.1} parent=1 // pred_fallthru
      _
    // Predicated region
    $region14: #{tpu_custom_call.1} parent=1 // pred_check
      _
    $region15: #{tpu_custom_call.1} parent=1 // pred_check_branch
      %21 = sbr.rel (0) target = $region17
    $region16: #{tpu_custom_call.1} parent=1 // pred_region
      _
    $region17: #{tpu_custom_call.1} parent=1 // pred_fallthru
      _
    // Predicated region
    $region18: #{tpu_custom_call.1} parent=1 // pred_check
      _
    $region19: #{tpu_custom_call.1} parent=1 // pred_check_branch
      %23 = sbr.rel (0) target = $region21
    $region20: #{tpu_custom_call.1} parent=1 // pred_region
      _
    $region21: #{tpu_custom_call.1} parent=1 // pred_fallthru
      _
    // Predicated region
    $region22: #{tpu_custom_call.1} parent=1 // pred_check
      _
    $region23: #{tpu_custom_call.1} parent=1 // pred_check_branch
      %25 = sbr.rel (0) target = $region25
    $region24: #{tpu_custom_call.1} parent=1 // pred_region
      _
    $region25: #{tpu_custom_call.1} parent=1 // pred_fallthru
      _
    // Predicated region
    $region26: #{tpu_custom_call.1} parent=1 // pred_check
      _
    $region27: #{tpu_custom_call.1} parent=1 // pred_check_branch
      %27 = sbr.rel (0) target = $region29
    $region28: #{tpu_custom_call.1} parent=1 // pred_region
      _
    $region29: #{tpu_custom_call.1} parent=1 // pred_fallthru
      _
    // Predicated region
    $region30: #{tpu_custom_call.1} parent=1 // pred_check
      _
    $region31: #{tpu_custom_call.1} parent=1 // pred_check_branch
      %29 = sbr.rel (0) target = $region33
    $region32: #{tpu_custom_call.1} parent=1 // pred_region
      _
    $region33: #{tpu_custom_call.1} parent=1 // pred_fallthru
      _
    %v31 = vld [vmem:[%s0] sm:$0xf]
    %v32 = vunpack.c.l.bf16 %v31
    %v33 = vld [vmem:[%s1] ss:$2 sm:$0x3]
    %s34 = scalar_lea.vmem %s1, 1
    %v35 = vld [vmem:[%s34] ss:$2 sm:$0x3]
    %v36 = vadd.s32 %v33, 4294967295
    %vm37 = vcmp.ge.s32.totalorder %v36, 0
    %vm38 = vcmp.lt.s32.totalorder %v36, 8
    %vm39 = vmand %vm37, %vm38
    %v40 = vadd.s32 %v35, 4294967295
    %vm41 = vcmp.ge.s32.totalorder %v40, 0
    %vm42 = vmand %vm39, %vm41
    %vm43 = vcmp.lt.s32.totalorder %v40, 8
    %vm44 = vmand %vm42, %vm43
    %vm45 = vcmp.ge.s32.totalorder %v35, 0
    %vm46 = vmand %vm39, %vm45
    %vm47 = vcmp.lt.s32.totalorder %v35, 8
    %vm48 = vmand %vm46, %vm47
    %v49 = vadd.s32 %v35, 1
    %vm50 = vcmp.ge.s32.totalorder %v49, 0
    %vm51 = vmand %vm39, %vm50
    %vm52 = vcmp.lt.s32.totalorder %v49, 8
    %vm53 = vmand %vm51, %vm52
    %vm54 = vcmp.ge.s32.totalorder %v33, 0
    %vm55 = vcmp.lt.s32.totalorder %v33, 8
    %vm56 = vmand %vm54, %vm55
    %vm57 = vmand %vm56, %vm41
    %vm58 = vmand %vm57, %vm43
    %vm59 = vmand %vm56, %vm50
    %vm60 = vmand %vm59, %vm52
    %v61 = vadd.s32 %v33, 1
    %vm62 = vcmp.ge.s32.totalorder %v61, 0
    %vm63 = vcmp.lt.s32.totalorder %v61, 8
    %vm64 = vmand %vm62, %vm63
    %vm65 = vmand %vm64, %vm41
    %vm66 = vmand %vm65, %vm43
    %vm67 = vmand %vm64, %vm45
    %vm68 = vmand %vm67, %vm47
    %vm69 = vmand %vm64, %vm50
    %vm70 = vmand %vm69, %vm52
    %v71 = vld [vmem:[%s2] sm:$0xf]
    %v72 = vld [vmem:[%s3] sm:$0xff]
    %v73 = vld [vmem:[%s4] sm:$0xff]
    %v75 = vcombine.high %v32, %v32
    %76 = vrot.lane.b32.xlu0 %v75, 9
    %v77 = vpop.permute.xlu0 %76
    %79 = vrot.lane.b32.xlu0 %v32, 9
    %v80 = vpop.permute.xlu0 %79
    %vm81 = vcmask 72704
    %v82 = vsel %vm81, %v80, %v77
    %v85 = vsel %vm81, %v77, %v80
    %v86 = vsel %vm44, 1, 0
    %v87 = vlaneseq
    %v88 = vshrl.u32 %v87, 7
    %v89 = vsub.s32 0, %v88
    %v90 = vrot.slane %v86, %v89
    %v91 = vlaneseq
    %v92 = vshrl.u32 %v91, 7
    %v93 = vsub.s32 1, %v92
    %v94 = vrot.slane %v86, %v93
    %vm95 = vcmp.eq.s32.totalorder %v90, 1
    %vm96 = vcmp.eq.s32.totalorder %v94, 1
    %v97 = vsel %vm95, %v85, 0.0
    %v98 = vsel %vm96, %v82, 0.0
    %99 = vrot.lane.b32.xlu0 %v75, 8
    %v100 = vpop.permute.xlu0 %99
    %102 = vrot.lane.b32.xlu0 %v32, 8
    %v103 = vpop.permute.xlu0 %102
    %vm104 = vcmask 64512
    %v105 = vsel %vm104, %v103, %v100
    %v108 = vsel %vm104, %v100, %v103
    %v109 = vsel %vm48, 1, 0
    %v110 = vlaneseq
    %v111 = vshrl.u32 %v110, 7
    %v112 = vsub.s32 0, %v111
    %v113 = vrot.slane %v109, %v112
    %v114 = vlaneseq
    %v115 = vshrl.u32 %v114, 7
    %v116 = vsub.s32 1, %v115
    %v117 = vrot.slane %v109, %v116
    %vm118 = vcmp.eq.s32.totalorder %v113, 1
    %vm119 = vcmp.eq.s32.totalorder %v117, 1
    %v120 = vsel %vm118, %v108, 0.0
    %v121 = vsel %vm119, %v105, 0.0
    %122 = vrot.lane.b32.xlu0 %v75, 7
    %v123 = vpop.permute.xlu0 %122
    %125 = vrot.lane.b32.xlu0 %v32, 7
    %v126 = vpop.permute.xlu0 %125
    %vm127 = vcmask 56320
    %v128 = vsel %vm127, %v126, %v123
    %v131 = vsel %vm127, %v123, %v126
    %v132 = vsel %vm53, 1, 0
    %v133 = vlaneseq
    %v134 = vshrl.u32 %v133, 7
    %v135 = vsub.s32 0, %v134
    %v136 = vrot.slane %v132, %v135
    %v137 = vlaneseq
    %v138 = vshrl.u32 %v137, 7
    %v139 = vsub.s32 1, %v138
    %v140 = vrot.slane %v132, %v139
    %vm141 = vcmp.eq.s32.totalorder %v136, 1
    %vm142 = vcmp.eq.s32.totalorder %v140, 1
    %v143 = vsel %vm141, %v131, 0.0
    %v144 = vsel %vm142, %v128, 0.0
    %145 = vrot.lane.b32.xlu0 %v75, 1
    %v146 = vpop.permute.xlu0 %145
    %148 = vrot.lane.b32.xlu0 %v32, 1
    %v149 = vpop.permute.xlu0 %148
    %vm150 = vcmask 7168
    %v151 = vsel %vm150, %v149, %v146
    %v154 = vsel %vm150, %v146, %v149
    %v155 = vsel %vm58, 1, 0
    %v156 = vlaneseq
    %v157 = vshrl.u32 %v156, 7
    %v158 = vsub.s32 0, %v157
    %v159 = vrot.slane %v155, %v158
    %v160 = vlaneseq
    %v161 = vshrl.u32 %v160, 7
    %v162 = vsub.s32 1, %v161
    %v163 = vrot.slane %v155, %v162
    %vm164 = vcmp.eq.s32.totalorder %v159, 1
    %vm165 = vcmp.eq.s32.totalorder %v163, 1
    %v166 = vsel %vm164, %v154, 0.0
    %v167 = vsel %vm165, %v151, 0.0
    %168 = vrot.lane.b32.xlu0 %v32, 127
    %v169 = vpop.permute.xlu0 %168
    %170 = vrot.lane.b32.xlu0 %v75, 127
    %v171 = vpop.permute.xlu0 %170
    %vm172 = vcmask 1039360
    %v173 = vsel %vm172, %v169, %v171
    %v177 = vsel %vm172, %v171, %v169
    %v178 = vsel %vm60, 1, 0
    %v179 = vlaneseq
    %v180 = vshrl.u32 %v179, 7
    %v181 = vsub.s32 0, %v180
    %v182 = vrot.slane %v178, %v181
    %v183 = vlaneseq
    %v184 = vshrl.u32 %v183, 7
    %v185 = vsub.s32 1, %v184
    %v186 = vrot.slane %v178, %v185
    %vm187 = vcmp.eq.s32.totalorder %v182, 1
    %vm188 = vcmp.eq.s32.totalorder %v186, 1
    %v189 = vsel %vm187, %v173, 0.0
    %v190 = vsel %vm188, %v177, 0.0
    %191 = vrot.lane.b32.xlu0 %v32, 121
    %v192 = vpop.permute.xlu0 %191
    %193 = vrot.lane.b32.xlu0 %v75, 121
    %v194 = vpop.permute.xlu0 %193
    %vm195 = vcmask 990208
    %v196 = vsel %vm195, %v192, %v194
    %v200 = vsel %vm195, %v194, %v192
    %v201 = vsel %vm66, 1, 0
    %v202 = vlaneseq
    %v203 = vshrl.u32 %v202, 7
    %v204 = vsub.s32 0, %v203
    %v205 = vrot.slane %v201, %v204
    %v206 = vlaneseq
    %v207 = vshrl.u32 %v206, 7
    %v208 = vsub.s32 1, %v207
    %v209 = vrot.slane %v201, %v208
    %vm210 = vcmp.eq.s32.totalorder %v205, 1
    %vm211 = vcmp.eq.s32.totalorder %v209, 1
    %v212 = vsel %vm210, %v196, 0.0
    %v213 = vsel %vm211, %v200, 0.0
    %214 = vrot.lane.b32.xlu0 %v32, 120
    %v215 = vpop.permute.xlu0 %214
    %216 = vrot.lane.b32.xlu0 %v75, 120
    %v217 = vpop.permute.xlu0 %216
    %vm218 = vcmask 982016
    %v219 = vsel %vm218, %v215, %v217
    %v223 = vsel %vm218, %v217, %v215
    %v224 = vsel %vm68, 1, 0
    %v225 = vlaneseq
    %v226 = vshrl.u32 %v225, 7
    %v227 = vsub.s32 0, %v226
    %v228 = vrot.slane %v224, %v227
    %v229 = vlaneseq
    %v230 = vshrl.u32 %v229, 7
    %v231 = vsub.s32 1, %v230
    %v232 = vrot.slane %v224, %v231
    %vm233 = vcmp.eq.s32.totalorder %v228, 1
    %vm234 = vcmp.eq.s32.totalorder %v232, 1
    %v235 = vsel %vm233, %v219, 0.0
    %v236 = vsel %vm234, %v223, 0.0
    %237 = vrot.lane.b32.xlu0 %v32, 119
    %v238 = vpop.permute.xlu0 %237
    %239 = vrot.lane.b32.xlu0 %v75, 119
    %v240 = vpop.permute.xlu0 %239
    %vm241 = vcmask 973824
    %v242 = vsel %vm241, %v238, %v240
    %v246 = vsel %vm241, %v240, %v238
    %v247 = vsel %vm70, 1, 0
    %v248 = vlaneseq
    %v249 = vshrl.u32 %v248, 7
    %v250 = vsub.s32 0, %v249
    %v251 = vrot.slane %v247, %v250
    %v252 = vlaneseq
    %v253 = vshrl.u32 %v252, 7
    %v254 = vsub.s32 1, %v253
    %v255 = vrot.slane %v247, %v254
    %vm256 = vcmp.eq.s32.totalorder %v251, 1
    %vm257 = vcmp.eq.s32.totalorder %v255, 1
    %v258 = vsel %vm256, %v242, 0.0
    %v259 = vsel %vm257, %v246, 0.0
    %v262 = vrot.slane %v120, 4
    %v263 = vrot.slane %v121, 4
    %v268 = vrot.slane %v166, 4
    %v269 = vrot.slane %v167, 4
    %v275 = vrot.slane %v189, 4
    %v276 = vrot.slane %v190, 4
    %v281 = vrot.slane %v235, 4
    %v282 = vrot.slane %v236, 4
    %vm285 = vcmask 1043456
    %v286 = vsel %vm285, %v97, %v262
    %v287 = vsel %vm285, %v98, %v263
    %v288 = vsel %vm285, %v143, %v268
    %v289 = vsel %vm285, %v144, %v269
    %v290 = vsel %vm285, %v32, %v275
    %v291 = vsel %vm285, %v75, %v276
    %v292 = vsel %vm285, %v212, %v281
    %v293 = vsel %vm285, %v213, %v282
    %v294 = vpack.c.bf16 %v288, %v286
    %v295 = vpack.c.bf16 %v289, %v287
    %v296 = vpack.c.bf16 %v292, %v290
    %v297 = vpack.c.bf16 %v293, %v291
    %v298 = vpack.c.bf16 %v258, %v258
    %v299 = vpack.c.bf16 %v259, %v259
    %vm300 = vcmask 293888
    %v302 = vsel %vm300, %v71, 0
    %vm304 = vcmask 1041408
    %v306 = vsel %vm304, %v298, 0
    %v309 = vsel %vm304, %v299, 0
    %311 = vmatprep.subr.bf16.mxu0 %v295
    %312 = vmatpush1.bf16.msra.mxu0 %v294
    %313 = vmatprep.subr.bf16.mxu0 %v297
    %314 = vmatpush1.bf16.msra.mxu0 %v296
    %315 = vmatprep.subr.bf16.mxu0 %v309
    %316 = vmatpush1.bf16.msra.mxu0 %v306
    %317 = vmatprep.subr.bf16.mxu0 0
    %318 = vmatpush1.bf16.msra.mxu0 0
    %319 = vmatprep.subr.bf16.mxu0 0
    %320 = vmatpush1.bf16.msra.mxu0 0
    %321 = vmatprep.subr.bf16.mxu0 0
    %322 = vmatpush1.bf16.msra.mxu0 0
    %323 = vmatprep.subr.bf16.mxu0 0
    %324 = vmatpush1.bf16.msra.mxu0 0
    %325 = vmatprep.subr.bf16.mxu0 0
    %326 = vmatpush1.bf16.msra.mxu0 0
    %327 = vmatprep.subr.bf16.mxu0 0
    %328 = vmatpush1.bf16.msra.mxu0 0
    %329 = vmatprep.subr.bf16.mxu0 0
    %330 = vmatpush1.bf16.msra.mxu0 0
    %331 = vmatprep.subr.bf16.mxu0 0
    %332 = vmatpush1.bf16.msra.mxu0 0
    %333 = vmatprep.subr.bf16.mxu0 0
    %334 = vmatpush1.bf16.msra.mxu0 0
    %335 = vmatprep.subr.bf16.mxu0 0
    %336 = vmatpush1.bf16.msra.mxu0 0
    %337 = vmatprep.subr.bf16.mxu0 0
    %338 = vmatpush1.bf16.msra.mxu0 0
    %339 = vmatprep.subr.bf16.mxu0 0
    %340 = vmatpush1.bf16.msra.mxu0 0
    %341 = vmatprep.subr.bf16.mxu0 0
    %342 = vmatpush1.bf16.msra.mxu0 0
    %343 = vmatprep.mubr.bf16.mxu0 0
    %344 = vmatmul.mubr.bf16.gmra.mrb[0].mxu0 %v302
    %v345 = vpop.f32.mrb[0].mxu0
    %v346 = vadd.f32 0.0, %v345
    %v347 = vpop.f32.mrb[0].mxu0
    %v348 = vadd.f32 0.0, %v347
    %v349 = vpop.f32.mrb[0].mxu0
    %v350 = vpop.f32.mrb[0].mxu0
    %351 = vdwg.mxu0
    %353 = vset.pattern.permute.xlu0 0
    %354 = vperm.xlu0 %353, %v72
    %v355 = vpop.permute.xlu0 %354
    %v357 = vmul.f32 %v346, %v355
    %v358 = vmul.f32 %v348, %v355
    %360 = vset.pattern.permute.xlu0 0
    %361 = vperm.xlu0 %360, %v73
    %v362 = vpop.permute.xlu0 %361
    %v364 = vadd.f32 %v357, %v362
    %v365 = vadd.f32 %v358, %v362
    %v366 = vmax.f32 %v364, 0.0
    %v367 = vmax.f32 %v365, 0.0
    %v368 = vld [vmem:[%s5] sm:$0xf]
    %v369 = vld [vmem:[%s6] sm:$0xff]
    %v370 = vld [vmem:[%s7] sm:$0xff]
    %372 = vrot.lane.b32.xlu0 %v367, 9
    %v373 = vpop.permute.xlu0 %372
    %376 = vrot.lane.b32.xlu0 %v366, 9
    %v377 = vpop.permute.xlu0 %376
    %v378 = vsel %vm81, %v377, %v373
    %v381 = vsel %vm81, %v373, %v377
    %v382 = vsel %vm95, %v381, 0.0
    %v383 = vsel %vm96, %v378, 0.0
    %384 = vrot.lane.b32.xlu0 %v367, 8
    %v385 = vpop.permute.xlu0 %384
    %387 = vrot.lane.b32.xlu0 %v366, 8
    %v388 = vpop.permute.xlu0 %387
    %v389 = vsel %vm104, %v388, %v385
    %v392 = vsel %vm104, %v385, %v388
    %v393 = vsel %vm118, %v392, 0.0
    %v394 = vsel %vm119, %v389, 0.0
    %395 = vrot.lane.b32.xlu0 %v367, 7
    %v396 = vpop.permute.xlu0 %395
    %398 = vrot.lane.b32.xlu0 %v366, 7
    %v399 = vpop.permute.xlu0 %398
    %v400 = vsel %vm127, %v399, %v396
    %v403 = vsel %vm127, %v396, %v399
    %v404 = vsel %vm141, %v403, 0.0
    %v405 = vsel %vm142, %v400, 0.0
    %406 = vrot.lane.b32.xlu0 %v367, 1
    %v407 = vpop.permute.xlu0 %406
    %409 = vrot.lane.b32.xlu0 %v366, 1
    %v410 = vpop.permute.xlu0 %409
    %v411 = vsel %vm150, %v410, %v407
    %v414 = vsel %vm150, %v407, %v410
    %v415 = vsel %vm164, %v414, 0.0
    %v416 = vsel %vm165, %v411, 0.0
    %417 = vrot.lane.b32.xlu0 %v366, 127
    %v418 = vpop.permute.xlu0 %417
    %419 = vrot.lane.b32.xlu0 %v367, 127
    %v420 = vpop.permute.xlu0 %419
    %v421 = vsel %vm172, %v418, %v420
    %v425 = vsel %vm172, %v420, %v418
    %v426 = vsel %vm187, %v421, 0.0
    %v427 = vsel %vm188, %v425, 0.0
    %428 = vrot.lane.b32.xlu0 %v366, 121
    %v429 = vpop.permute.xlu0 %428
    %430 = vrot.lane.b32.xlu0 %v367, 121
    %v431 = vpop.permute.xlu0 %430
    %v432 = vsel %vm195, %v429, %v431
    %v436 = vsel %vm195, %v431, %v429
    %v437 = vsel %vm210, %v432, 0.0
    %v438 = vsel %vm211, %v436, 0.0
    %439 = vrot.lane.b32.xlu0 %v366, 120
    %v440 = vpop.permute.xlu0 %439
    %441 = vrot.lane.b32.xlu0 %v367, 120
    %v442 = vpop.permute.xlu0 %441
    %v443 = vsel %vm218, %v440, %v442
    %v447 = vsel %vm218, %v442, %v440
    %v448 = vsel %vm233, %v443, 0.0
    %v449 = vsel %vm234, %v447, 0.0
    %450 = vrot.lane.b32.xlu0 %v366, 119
    %v451 = vpop.permute.xlu0 %450
    %452 = vrot.lane.b32.xlu0 %v367, 119
    %v453 = vpop.permute.xlu0 %452
    %v454 = vsel %vm241, %v451, %v453
    %v458 = vsel %vm241, %v453, %v451
    %v459 = vsel %vm256, %v454, 0.0
    %v460 = vsel %vm257, %v458, 0.0
    %v461 = vpack.c.bf16 %v393, %v382
    %v462 = vpack.c.bf16 %v394, %v383
    %v463 = vpack.c.bf16 %v415, %v404
    %v464 = vpack.c.bf16 %v416, %v405
    %v465 = vpack.c.bf16 %v426, %v366
    %v466 = vpack.c.bf16 %v427, %v367
    %v467 = vpack.c.bf16 %v448, %v437
    %v468 = vpack.c.bf16 %v449, %v438
    %v469 = vpack.c.bf16 %v459, %v459
    %v470 = vpack.c.bf16 %v460, %v460
    %vm471 = vcmask 588800
    %v473 = vsel %vm471, %v368, 0
    %v476 = vsel %vm285, %v469, 0
    %v479 = vsel %vm285, %v470, 0
    %481 = vmatprep.subr.bf16.mxu0 %v462
    %482 = vmatpush1.bf16.msra.mxu0 %v461
    %483 = vmatprep.subr.bf16.mxu0 %v464
    %484 = vmatpush1.bf16.msra.mxu0 %v463
    %485 = vmatprep.subr.bf16.mxu0 %v466
    %486 = vmatpush1.bf16.msra.mxu0 %v465
    %487 = vmatprep.subr.bf16.mxu0 %v468
    %488 = vmatpush1.bf16.msra.mxu0 %v467
    %489 = vmatprep.subr.bf16.mxu0 %v479
    %490 = vmatpush1.bf16.msra.mxu0 %v476
    %491 = vmatprep.subr.bf16.mxu0 0
    %492 = vmatpush1.bf16.msra.mxu0 0
    %493 = vmatprep.subr.bf16.mxu0 0
    %494 = vmatpush1.bf16.msra.mxu0 0
    %495 = vmatprep.subr.bf16.mxu0 0
    %496 = vmatpush1.bf16.msra.mxu0 0
    %497 = vmatprep.subr.bf16.mxu0 0
    %498 = vmatpush1.bf16.msra.mxu0 0
    %499 = vmatprep.subr.bf16.mxu0 0
    %500 = vmatpush1.bf16.msra.mxu0 0
    %501 = vmatprep.subr.bf16.mxu0 0
    %502 = vmatpush1.bf16.msra.mxu0 0
    %503 = vmatprep.subr.bf16.mxu0 0
    %504 = vmatpush1.bf16.msra.mxu0 0
    %505 = vmatprep.subr.bf16.mxu0 0
    %506 = vmatpush1.bf16.msra.mxu0 0
    %507 = vmatprep.subr.bf16.mxu0 0
    %508 = vmatpush1.bf16.msra.mxu0 0
    %509 = vmatprep.subr.bf16.mxu0 0
    %510 = vmatpush1.bf16.msra.mxu0 0
    %511 = vmatprep.subr.bf16.mxu0 0
    %512 = vmatpush1.bf16.msra.mxu0 0
    %513 = vmatprep.mubr.bf16.mxu0 0
    %514 = vmatmul.mubr.bf16.gmra.mrb[0].mxu0 %v473
    %v515 = vpop.f32.mrb[0].mxu0
    %v516 = vadd.f32 0.0, %v515
    %v517 = vpop.f32.mrb[0].mxu0
    %v518 = vadd.f32 0.0, %v517
    %v519 = vpop.f32.mrb[0].mxu0
    %v520 = vpop.f32.mrb[0].mxu0
    %521 = vdwg.mxu0
    %523 = vset.pattern.permute.xlu0 0
    %524 = vperm.xlu0 %523, %v369
    %v525 = vpop.permute.xlu0 %524
    %v527 = vmul.f32 %v516, %v525
    %v528 = vmul.f32 %v518, %v525
    %530 = vset.pattern.permute.xlu0 0
    %531 = vperm.xlu0 %530, %v370
    %v532 = vpop.permute.xlu0 %531
    %v534 = vadd.f32 %v527, %v532
    %v535 = vadd.f32 %v528, %v532
    %v536 = vmax.f32 %v534, 0.0
    %v537 = vmax.f32 %v535, 0.0
    %538 = vst [vmem:[#allocation2] sm:$0xff] %v536
    %539 = vst [vmem:[#allocation2 + $0x8] sm:$0xff] %v537
    // Predicated region
    $region34: #{tpu_custom_call.1} parent=1 // pred_check
      _
    $region35: #{tpu_custom_call.1} parent=1 // pred_check_branch
      %541 = sbr.rel (0) target = $region37
    $region36: #{tpu_custom_call.1} parent=1 // pred_region
      %s543 = ssub.s32 256, 256
      %544 = vsyncadd [#allocation3], %s543
      %s546 = sshll.u32 [#allocation2], 4
      %s547 = int_to_ptr.vmem [resolvable:$true] %s546
      %549 = dma.vmem_to_hbm [thread:$0]  %s547, 256, %s8, [#allocation3]
    $region37: #{tpu_custom_call.1} parent=1 // pred_fallthru
      _
    // Predicated region
    $region38: #{tpu_custom_call.1} parent=1 // pred_check
      _
    $region39: #{tpu_custom_call.1} parent=1 // pred_check_branch
      %551 = sbr.rel (0) target = $region41
    $region40: #{tpu_custom_call.1} parent=1 // pred_region
      %552 = dma.done [#allocation3], 256
    $region41: #{tpu_custom_call.1} parent=1 // pred_fallthru
      _
    %553 = vsyncpa [#allocation3], 1

</llo_original>
